<compile_context>
chip_gen: v6e
topology: v6e:2x2x1
jax: 0.10.0
libtpu: 0.0.40
codegen_flags: <defaults>
</compile_context>

<pallas_src>
import functools
from typing import NamedTuple

import jax
import jax.numpy as jnp
from jax.experimental import pallas as pl
from jax.experimental.pallas import tpu as pltpu


def _round_up(a: int, b: int) -> int:
    return (a + b - 1) // b * b


def _cdiv(a: int, b: int) -> int:
    return (a + b - 1) // b


class HighwayParams(NamedTuple):
    w_cat: jax.Array  # (E_pad, 2*E_pad): fused [Wp^T | Wg^T], zero-padded to 128 lanes
    b_cat: jax.Array  # (1, 2*E_pad):     fused [bp | bg], f32
    emb: int          # original embed size E


def fuse_highway_params(w_proj, b_proj, w_gate, b_gate, *, param_dtype=None) -> HighwayParams:
    """Fuse and pad the two Linear layers once, at parameter-setup time.

    PyTorch nn.Linear stores W as (out, in); y = x @ W^T + b.  We pre-transpose,
    pad E up to a lane-dense multiple of 128 and concatenate [proj | gate] along
    the output axis so the kernel issues a single MXU dot per row tile.
    Pass param_dtype=jnp.bfloat16 to enable the bf16 MXU path on v6e/v7x.
    """
    w_proj = jnp.asarray(w_proj)
    e = int(w_proj.shape[0])
    e_pad = _round_up(max(e, 128), 128)
    pad = e_pad - e
    dt = jnp.dtype(param_dtype) if param_dtype is not None else w_proj.dtype
    wp_t = jnp.pad(w_proj.T, ((0, pad), (0, pad)))
    wg_t = jnp.pad(jnp.asarray(w_gate).T, ((0, pad), (0, pad)))
    w_cat = jnp.concatenate([wp_t, wg_t], axis=1).astype(dt)            # (E_pad, 2*E_pad)
    b_cat = jnp.concatenate(
        [jnp.pad(jnp.asarray(b_proj), (0, pad)),
         jnp.pad(jnp.asarray(b_gate), (0, pad))]
    ).reshape(1, 2 * e_pad).astype(jnp.float32)                         # (1, 2*E_pad)
    # TODO(synk): optional fp8 fused-weight path (per-column scales) for the v7x MXU.
    return HighwayParams(w_cat=w_cat, b_cat=b_cat, emb=e)


# -----------------------------------------------------------------------------
# Kernels
# -----------------------------------------------------------------------------
def _gate_from_logits(yg, approx_gate):
    if approx_gate:
        # exp on the EUP, approx reciprocal also on the EUP -> frees VALU slots.
        return pl.reciprocal(1.0 + jnp.exp(-yg), approx=True)
    return 1.0 / (1.0 + jnp.exp(-yg))


def _highway_kernel_resident(x_ref, w_ref, b_ref, o_ref, *, approx_gate):
    """One (TM, E_pad) row tile; fused weight fully resident in VMEM.

    x_ref : (TM, E_pad)        input rows (native dtype, fed straight to MXU)
    w_ref : (E_pad, 2*E_pad)   fused [Wp^T | Wg^T]
    b_ref : (1, 2*E_pad)       fused [bp | bg] (f32)
    o_ref : (TM, E_pad)        output rows
    """
    e = o_ref.shape[-1]
    x = x_ref[...]
    y = jnp.dot(x, w_ref[...], preferred_element_type=jnp.float32) + b_ref[...]
    proj = jnp.maximum(y[:, :e], 0.0)                 # ReLU branch
    gate = _gate_from_logits(y[:, e:], approx_gate)   # sigmoid gate
    xf = x.astype(jnp.float32)
    # gate*proj + (1-gate)*x  ==  x + gate*(proj - x)   (one fewer VPU multiply)
    o_ref[...] = (xf + gate * (proj - xf)).astype(o_ref.dtype)


def _highway_kernel_ktiled(xk_ref, xfull_ref, w_ref, b_ref, o_ref, acc_ref, *, approx_gate):
    """K-tiled variant for large E (fused weight streamed in (TK, 2*E_pad) slabs).

    xk_ref    : (TM, TK)        x K-slice (matmul LHS)
    xfull_ref : (TM, E_pad)     full x rows (residual, DMA'd once per row tile)
    w_ref     : (TK, 2*E_pad)   fused weight K-slab
    b_ref     : (1, 2*E_pad)    fused bias (resident)
    o_ref     : (TM, E_pad)     output rows (written on the last K step)
    acc_ref   : (TM, 2*E_pad)   f32 accumulator scratch
    """
    k = pl.program_id(1)

    @pl.when(k == 0)
    def _init():
        acc_ref[...] = jnp.zeros_like(acc_ref)

    acc_ref[...] += jnp.dot(xk_ref[...], w_ref[...],
                            preferred_element_type=jnp.float32)

    @pl.when(k == pl.num_programs(1) - 1)
    def _finalize():
        e = o_ref.shape[-1]
        y = acc_ref[...] + b_ref[...]
        proj = jnp.maximum(y[:, :e], 0.0)
        gate = _gate_from_logits(y[:, e:], approx_gate)
        xf = xfull_ref[...].astype(jnp.float32)
        o_ref[...] = (xf + gate * (proj - xf)).astype(o_ref.dtype)


# -----------------------------------------------------------------------------
# Wrapper
# -----------------------------------------------------------------------------
def _pick_tm(m, e_pad, tm, *, k_tiled):
    if tm is None:
        if k_tiled or e_pad >= 2048:
            tm = 256     # keep (TM, 2*E_pad) f32 pre-activation small (v7x 64 MiB VMEM)
        elif e_pad > 1024:
            tm = 512
        else:
            tm = 1024    # amortize ~0.35us per grid step on v5e/v6e (128 MiB VMEM)
    tm = max(8, min(int(tm), _round_up(m, 8)))
    # Dual-TC (v7x) / megacore: keep >= 2 grid steps when there is enough work.
    if m >= 1024 and _cdiv(m, tm) < 2:
        tm = _round_up(_cdiv(m, 2), 8)
    return tm


def _highway_xla(x, params: HighwayParams):
    """Plain-XLA fallback for tiny shapes (E < 64 or very small M*E)."""
    e = params.emb
    ep = int(params.w_cat.shape[0])
    xf = x.astype(jnp.float32)
    y = jnp.einsum("lbe,ef->lbf", xf, params.w_cat[:e].astype(jnp.float32)) + params.b_cat[0]
    proj = jax.nn.relu(y[..., :e])
    gate = jax.nn.sigmoid(y[..., ep:ep + e])
    return (xf + gate * (proj - xf)).astype(x.dtype)


def highway_forward(x, params: HighwayParams, *, tm=None, tk=None,
                    force_pallas=False, force_k_tiled=False,
                    resident_limit_bytes=48 * 1024 * 1024,
                    approx_gate=False):
    """Highway forward for x of shape (L, B, E) using pre-fused params."""
    L, B, E = x.shape
    assert E == params.emb, "x embed size does not match fused params"
    M = L * B
    out_dtype = x.dtype
    E_pad = int(params.w_cat.shape[0])
    two_e = 2 * E_pad

    # Small-shape fallback: padding E up to 128 lanes plus launch/pad overhead
    # dominates -> plain XLA is the right tool there.
    if not force_pallas and (E < 64 or M * E < 16384):
        return _highway_xla(x, params)

    x2d = x.reshape(M, E)
    if E_pad != E:
        x2d = jnp.pad(x2d, ((0, 0), (0, E_pad - E)))
    if x2d.dtype != params.w_cat.dtype:
        x2d = x2d.astype(params.w_cat.dtype)   # matching MXU operand dtype (e.g. bf16)

    x_isz = x2d.dtype.itemsize
    w_isz = params.w_cat.dtype.itemsize
    o_isz = jnp.dtype(out_dtype).itemsize

    tm_res = _pick_tm(M, E_pad, tm, k_tiled=False)
    resident_bytes = (2 * tm_res * E_pad * x_isz       # x tiles (double-buffered)
                      + 2 * tm_res * E_pad * o_isz     # out tiles (double-buffered)
                      + E_pad * two_e * w_isz          # fused weight (single-buffered)
                      + two_e * 4                      # fused bias
                      + 3 * tm_res * two_e * 4)        # f32 pre-activation + epilogue temps
    k_tiled = force_k_tiled or resident_bytes > resident_limit_bytes

    cost = pl.CostEstimate(
        flops=int(4 * M * E_pad * E_pad),               # (M,E)@(E,2E)
        transcendentals=int(2 * M * E_pad),             # exp + reciprocal
        bytes_accessed=int(M * E_pad * (x_isz + o_isz)
                           + E_pad * two_e * w_isz + two_e * 4),
    )

    if not k_tiled:
        TM = tm_res
        grid = (_cdiv(M, TM),)
        vmem_limit = int(min(max(resident_bytes * 1.3, 32 * 2**20), 100 * 2**20))
        kernel = functools.partial(_highway_kernel_resident, approx_gate=approx_gate)

        def run(single_buffer):
            def const_spec(shape):
                if single_buffer:
                    return pl.BlockSpec(shape, lambda i: (0, 0),
                                        pipeline_mode=pl.Buffered(1))
                return pl.BlockSpec(shape, lambda i: (0, 0))

            return pl.pallas_call(
                kernel,
                out_shape=jax.ShapeDtypeStruct((M, E_pad), out_dtype),
                grid_spec=pltpu.PrefetchScalarGridSpec(
                    num_scalar_prefetch=0,
                    grid=grid,
                    in_specs=[
                        pl.BlockSpec((TM, E_pad), lambda i: (i, 0)),   # x rows
                        const_spec((E_pad, two_e)),                    # fused W (resident)
                        const_spec((1, two_e)),                        # fused b (resident)
                    ],
                    out_specs=pl.BlockSpec((TM, E_pad), lambda i: (i, 0)),
                ),
                compiler_params=pltpu.CompilerParams(
                    dimension_semantics=("parallel",),
                    vmem_limit_bytes=vmem_limit),
                cost_estimate=cost,
            )(x2d, params.w_cat, params.b_cat)

    else:
        TM = _pick_tm(M, E_pad, tm, k_tiled=True)
        if tk is None:
            TK = 512 if E_pad % 512 == 0 else (256 if E_pad % 256 == 0 else 128)
        else:
            TK = max(128, min(int(tk), E_pad))
            if E_pad % TK != 0:
                TK = 128
        grid = (_cdiv(M, TM), E_pad // TK)
        ktile_bytes = (2 * TM * TK * x_isz               # x K-slices (double-buffered)
                       + 2 * TM * E_pad * x_isz          # x full rows (residual)
                       + 2 * TK * two_e * w_isz          # weight K-slabs (double-buffered)
                       + two_e * 4                       # bias
                       + 2 * TM * E_pad * o_isz          # out tiles
                       + TM * two_e * 4                  # f32 accumulator scratch
                       + 2 * TM * two_e * 4)             # epilogue temps
        vmem_limit = int(min(max(ktile_bytes * 1.3, 32 * 2**20), 100 * 2**20))
        kernel = functools.partial(_highway_kernel_ktiled, approx_gate=approx_gate)

        def run(single_buffer):
            if single_buffer:
                b_spec = pl.BlockSpec((1, two_e), lambda i, k: (0, 0),
                                      pipeline_mode=pl.Buffered(1))
            else:
                b_spec = pl.BlockSpec((1, two_e), lambda i, k: (0, 0))

            return pl.pallas_call(
                kernel,
                out_shape=jax.ShapeDtypeStruct((M, E_pad), out_dtype),
                grid_spec=pltpu.PrefetchScalarGridSpec(
                    num_scalar_prefetch=0,
                    grid=grid,
                    in_specs=[
                        pl.BlockSpec((TM, TK), lambda i, k: (i, k)),      # x (matmul LHS)
                        pl.BlockSpec((TM, E_pad), lambda i, k: (i, 0)),   # x (residual rows)
                        pl.BlockSpec((TK, two_e), lambda i, k: (k, 0)),   # weight K-slab
                        b_spec,                                           # fused b (resident)
                    ],
                    out_specs=pl.BlockSpec((TM, E_pad), lambda i, k: (i, 0)),
                    scratch_shapes=[pltpu.VMEM((TM, two_e), jnp.float32)],
                ),
                compiler_params=pltpu.CompilerParams(
                    dimension_semantics=("parallel", "arbitrary"),
                    vmem_limit_bytes=vmem_limit),
                cost_estimate=cost,
            )(x2d, x2d, params.w_cat, params.b_cat)

    try:
        out2d = run(True)
    except Exception:
        # Fallback for jax versions without BlockSpec(pipeline_mode=pl.Buffered(1));
        # correctness identical, weight just stays double-buffered.
        out2d = run(False)

    if E_pad != E:
        out2d = out2d[:, :E]
    return out2d.reshape(L, B, E)


def highway_reference(x, w_proj, b_proj, w_gate, b_gate):
    """Pure-JAX reference mirroring the PyTorch forward."""
    proj = jax.nn.relu(jnp.einsum("lbe,oe->lbo", x, w_proj) + b_proj)
    gate = jax.nn.sigmoid(jnp.einsum("lbe,oe->lbo", x, w_gate) + b_gate)
    return proj * gate + (1.0 - gate) * x


if __name__ == "__main__":
    key = jax.random.PRNGKey(0)
    keys = jax.random.split(key, 10)

    # ---- Test 1: module's natural small shape through the resident Pallas path.
    L, B, E = 8, 2, 32
    x = jax.random.normal(keys[0], (L, B, E), dtype=jnp.float32)
    bound = 1.0 / float(E) ** 0.5
    w_proj = jax.random.uniform(keys[1], (E, E), jnp.float32, -bound, bound)
    b_proj = jax.random.uniform(keys[2], (E,), jnp.float32, -bound, bound)
    w_gate = jax.random.uniform(keys[3], (E, E), jnp.float32, -bound, bound)
    b_gate = jax.random.uniform(keys[4], (E,), jnp.float32, -bound, bound)
    params = fuse_highway_params(w_proj, b_proj, w_gate, b_gate)
    ref = highway_reference(x, w_proj, b_proj, w_gate, b_gate)

    out = jax.block_until_ready(highway_forward(x, params, force_pallas=True))
    assert out.shape == (L, B, E)
    assert jnp.allclose(out, ref, atol=1e-5, rtol=1e-5), "resident-path mismatch"

    # Default dispatch uses the small-shape XLA fallback here; check it too.
    out_fb = jax.block_until_ready(highway_forward(x, params))
    assert jnp.allclose(out_fb, ref, atol=1e-5, rtol=1e-5), "fallback mismatch"

    # ---- Test 2: force the K-tiled (large-E) path on a small lane-aligned shape.
    L2, B2, E2 = 16, 8, 256
    x2 = jax.random.normal(keys[5], (L2, B2, E2), dtype=jnp.float32)
    bound2 = 1.0 / float(E2) ** 0.5
    w_proj2 = jax.random.uniform(keys[6], (E2, E2), jnp.float32, -bound2, bound2)
    b_proj2 = jax.random.uniform(keys[7], (E2,), jnp.float32, -bound2, bound2)
    w_gate2 = jax.random.uniform(keys[8], (E2, E2), jnp.float32, -bound2, bound2)
    b_gate2 = jax.random.uniform(keys[9], (E2,), jnp.float32, -bound2, bound2)
    params2 = fuse_highway_params(w_proj2, b_proj2, w_gate2, b_gate2)
    ref2 = highway_reference(x2, w_proj2, b_proj2, w_gate2, b_gate2)

    out2 = jax.block_until_ready(
        highway_forward(x2, params2, force_pallas=True, force_k_tiled=True, tk=128))
    assert out2.shape == (L2, B2, E2)
    assert jnp.allclose(out2, ref2, atol=1e-4, rtol=1e-4), "k-tiled-path mismatch"

    # ---- Test 3: approx-EUP sigmoid micro-opt (loose tolerance covers approx recip).
    out3 = jax.block_until_ready(
        highway_forward(x, params, force_pallas=True, approx_gate=True))
    assert jnp.allclose(out3, ref, atol=5e-2, rtol=5e-2), "approx-gate mismatch"

    print("KERNEL_OK")
</pallas_src>

<mosaic_0001>
module attributes {stable_mosaic.version = 11 : i64} {
  func.func @_highway_kernel_resident(%arg0: i32, %arg1: memref<16x128xf32, #tpu.memory_space<vmem>>, %arg2: memref<128x256xf32, #tpu.memory_space<vmem>>, %arg3: memref<1x256xf32, #tpu.memory_space<vmem>>, %arg4: memref<16x128xf32, #tpu.memory_space<vmem>>) attributes {dimension_semantics = [#tpu.dimension_semantics<parallel>], iteration_bounds = array<i64: 1>, scalar_prefetch = 0 : i64, scratch_operands = 0 : i64, tpu.core_type = #tpu.core_type<tc>, window_params = [{transform_indices = @transform_0, window_bounds = array<i64: 16, 128>}, {pipeline_mode = #tpu.pipeline_mode<synchronous>, transform_indices = @transform_1, window_bounds = array<i64: 128, 256>}, {pipeline_mode = #tpu.pipeline_mode<synchronous>, transform_indices = @transform_2, window_bounds = array<i64: 1, 256>}, {transform_indices = @transform_3, window_bounds = array<i64: 16, 128>}]} {
    %c0 = arith.constant 0 : index
    %c0_0 = arith.constant 0 : index
    %0 = vector.load %arg1[%c0, %c0_0] : memref<16x128xf32, #tpu.memory_space<vmem>>, vector<16x128xf32>
    %c0_1 = arith.constant 0 : index
    %c0_2 = arith.constant 0 : index
    %1 = vector.load %arg2[%c0_1, %c0_2] : memref<128x256xf32, #tpu.memory_space<vmem>>, vector<128x256xf32>
    %cst = arith.constant dense<0.000000e+00> : vector<16x256xf32>
    %2 = tpu.matmul %0, %1, %cst {dimension_numbers = #tpu.dot_dimension_numbers<[1], [0], [0], [1], [0, 0, 1, 1], [], []>} : vector<16x128xf32>, vector<128x256xf32>, vector<16x256xf32> -> vector<16x256xf32>
    %c0_3 = arith.constant 0 : index
    %c0_4 = arith.constant 0 : index
    %3 = vector.load %arg3[%c0_3, %c0_4] : memref<1x256xf32, #tpu.memory_space<vmem>>, vector<1x256xf32>
    %4 = vector.broadcast %3 : vector<1x256xf32> to vector<16x256xf32>
    %5 = arith.addf %2, %4 : vector<16x256xf32>
    %6 = vector.extract_strided_slice %5 {offsets = [0, 0], sizes = [16, 128], strides = [1, 1]} : vector<16x256xf32> to vector<16x128xf32>
    %cst_5 = arith.constant 0.000000e+00 : f32
    %7 = vector.broadcast %cst_5 : f32 to vector<16x128xf32>
    %8 = arith.maximumf %6, %7 : vector<16x128xf32>
    %9 = vector.extract_strided_slice %5 {offsets = [0, 128], sizes = [16, 128], strides = [1, 1]} : vector<16x256xf32> to vector<16x128xf32>
    %cst_6 = arith.constant 0.000000e+00 : f32
    %10 = vector.broadcast %cst_6 : f32 to vector<16x128xf32>
    %11 = arith.subf %10, %9 : vector<16x128xf32>
    %12 = math.exp %11 : vector<16x128xf32>
    %cst_7 = arith.constant 1.000000e+00 : f32
    %13 = vector.broadcast %cst_7 : f32 to vector<16x128xf32>
    %14 = arith.addf %13, %12 : vector<16x128xf32>
    %cst_8 = arith.constant 1.000000e+00 : f32
    %15 = vector.broadcast %cst_8 : f32 to vector<16x128xf32>
    %16 = arith.divf %15, %14 : vector<16x128xf32>
    %17 = arith.subf %8, %0 : vector<16x128xf32>
    %18 = arith.mulf %16, %17 : vector<16x128xf32>
    %19 = arith.addf %0, %18 : vector<16x128xf32>
    %c0_9 = arith.constant 0 : index
    %c0_10 = arith.constant 0 : index
    %20 = vector.load %arg4[%c0_9, %c0_10] : memref<16x128xf32, #tpu.memory_space<vmem>>, vector<16x128xf32>
    tpu.vector_store %arg4[%c0_9, %c0_10], %19 {strides = array<i32>} : memref<16x128xf32, #tpu.memory_space<vmem>>, vector<16x128xf32>,
    return
  }
  func.func @transform_0(%arg0: i32) -> (i32, i32) {
    %c0_i32 = arith.constant 0 : i32
    %c0_i32_0 = arith.constant 0 : i32
    return %arg0, %c0_i32 : i32, i32
  }
  func.func @transform_1(%arg0: i32) -> (i32, i32) {
    %c0_i32 = arith.constant 0 : i32
    %c0_i32_0 = arith.constant 0 : i32
    %c0_i32_1 = arith.constant 0 : i32
    return %c0_i32, %c0_i32_0 : i32, i32
  }
  func.func @transform_2(%arg0: i32) -> (i32, i32) {
    %c0_i32 = arith.constant 0 : i32
    %c0_i32_0 = arith.constant 0 : i32
    %c0_i32_1 = arith.constant 0 : i32
    return %c0_i32, %c0_i32_0 : i32, i32
  }
  func.func @transform_3(%arg0: i32) -> (i32, i32) {
    %c0_i32 = arith.constant 0 : i32
    %c0_i32_0 = arith.constant 0 : i32
    return %arg0, %c0_i32 : i32, i32
  }
}

module attributes {stable_mosaic.version = 11 : i64} {
  func.func @_highway_kernel_resident(%arg0: i32, %arg1: memref<16x128xf32, #tpu.memory_space<vmem>>, %arg2: memref<128x256xf32, #tpu.memory_space<vmem>>, %arg3: memref<1x256xf32, #tpu.memory_space<vmem>>, %arg4: memref<16x128xf32, #tpu.memory_space<vmem>>) attributes {dimension_semantics = [#tpu.dimension_semantics<parallel>], iteration_bounds = array<i64: 1>, scalar_prefetch = 0 : i64, scratch_operands = 0 : i64, tpu.core_type = #tpu.core_type<tc>, window_params = [{transform_indices = @transform_0, window_bounds = array<i64: 16, 128>}, {pipeline_mode = #tpu.pipeline_mode<synchronous>, transform_indices = @transform_1, window_bounds = array<i64: 128, 256>}, {pipeline_mode = #tpu.pipeline_mode<synchronous>, transform_indices = @transform_2, window_bounds = array<i64: 1, 256>}, {transform_indices = @transform_3, window_bounds = array<i64: 16, 128>}]} {
    %c0 = arith.constant 0 : index
    %c0_0 = arith.constant 0 : index
    %0 = vector.load %arg1[%c0, %c0_0] : memref<16x128xf32, #tpu.memory_space<vmem>>, vector<16x128xf32>
    %c0_1 = arith.constant 0 : index
    %c0_2 = arith.constant 0 : index
    %1 = vector.load %arg2[%c0_1, %c0_2] : memref<128x256xf32, #tpu.memory_space<vmem>>, vector<128x256xf32>
    %cst = arith.constant dense<0.000000e+00> : vector<16x256xf32>
    %2 = tpu.matmul %0, %1, %cst {dimension_numbers = #tpu.dot_dimension_numbers<[1], [0], [0], [1], [0, 0, 1, 1], [], []>} : vector<16x128xf32>, vector<128x256xf32>, vector<16x256xf32> -> vector<16x256xf32>
    %c0_3 = arith.constant 0 : index
    %c0_4 = arith.constant 0 : index
    %3 = vector.load %arg3[%c0_3, %c0_4] : memref<1x256xf32, #tpu.memory_space<vmem>>, vector<1x256xf32>
    %4 = vector.broadcast %3 : vector<1x256xf32> to vector<16x256xf32>
    %5 = arith.addf %2, %4 : vector<16x256xf32>
    %6 = vector.extract_strided_slice %5 {offsets = [0, 0], sizes = [16, 128], strides = [1, 1]} : vector<16x256xf32> to vector<16x128xf32>
    %cst_5 = arith.constant 0.000000e+00 : f32
    %7 = vector.broadcast %cst_5 : f32 to vector<16x128xf32>
    %8 = arith.maximumf %6, %7 : vector<16x128xf32>
    %9 = vector.extract_strided_slice %5 {offsets = [0, 128], sizes = [16, 128], strides = [1, 1]} : vector<16x256xf32> to vector<16x128xf32>
    %cst_6 = arith.constant 0.000000e+00 : f32
    %10 = vector.broadcast %cst_6 : f32 to vector<16x128xf32>
    %11 = arith.subf %10, %9 : vector<16x128xf32>
    %12 = math.exp %11 : vector<16x128xf32>
    %cst_7 = arith.constant 1.000000e+00 : f32
    %13 = vector.broadcast %cst_7 : f32 to vector<16x128xf32>
    %14 = arith.addf %13, %12 : vector<16x128xf32>
    %cst_8 = arith.constant 1.000000e+00 : f32
    %15 = vector.broadcast %cst_8 : f32 to vector<16x128xf32>
    %16 = arith.divf %15, %14 : vector<16x128xf32>
    %17 = arith.subf %8, %0 : vector<16x128xf32>
    %18 = arith.mulf %16, %17 : vector<16x128xf32>
    %19 = arith.addf %0, %18 : vector<16x128xf32>
    %c0_9 = arith.constant 0 : index
    %c0_10 = arith.constant 0 : index
    %20 = vector.load %arg4[%c0_9, %c0_10] : memref<16x128xf32, #tpu.memory_space<vmem>>, vector<16x128xf32>
    tpu.vector_store %arg4[%c0_9, %c0_10], %19 {strides = array<i32>} : memref<16x128xf32, #tpu.memory_space<vmem>>, vector<16x128xf32>,
    return
  }
  func.func @transform_0(%arg0: i32) -> (i32, i32) {
    %c0_i32 = arith.constant 0 : i32
    %c0_i32_0 = arith.constant 0 : i32
    return %arg0, %c0_i32 : i32, i32
  }
  func.func @transform_1(%arg0: i32) -> (i32, i32) {
    %c0_i32 = arith.constant 0 : i32
    %c0_i32_0 = arith.constant 0 : i32
    %c0_i32_1 = arith.constant 0 : i32
    return %c0_i32, %c0_i32_0 : i32, i32
  }
  func.func @transform_2(%arg0: i32) -> (i32, i32) {
    %c0_i32 = arith.constant 0 : i32
    %c0_i32_0 = arith.constant 0 : i32
    %c0_i32_1 = arith.constant 0 : i32
    return %c0_i32, %c0_i32_0 : i32, i32
  }
  func.func @transform_3(%arg0: i32) -> (i32, i32) {
    %c0_i32 = arith.constant 0 : i32
    %c0_i32_0 = arith.constant 0 : i32
    return %arg0, %c0_i32 : i32, i32
  }
}

</mosaic_0001>

<llo_original>
// kernel: tpu_custom_call.1
$region0: #{tpu_custom_call.1}
  #allocation0 [shape = 'u32[]', space=smem, size = 0x4, offset = 0x4, fixed_abs, tag = 'smem constant byte address 0x4 - core index']
  #allocation1 [shape = 'u32[144,128]{1,0:T(1,128)}', space=vmem, size = 0x12000, scoped, tag = 'internal scratch']
  %s0 = inlined_call_operand.hbm [shape: f32[16,128], index: 0, kind: input, shape index: {}]
  %s1 = inlined_call_operand.hbm [shape: f32[128,256], index: 1, kind: input, shape index: {}]
  %s2 = inlined_call_operand.vmem [shape: f32[1,256], index: 2, kind: input, shape index: {}]
  %s3 = inlined_call_operand.hbm [shape: f32[16,128], index: 3, kind: output, shape index: {}]
  %s4 = sld [smem:[#allocation0]]
  $region30: #{tpu_custom_call.1} parent=0
    _
  %s6 = ssub.s32 1, %s4
  %s7 = scalar_select 0, %s6, %s4
  $region1: #{tpu_custom_call.1} parent=0
    #allocation2 [shape = 'u8[8192]{0}', space=vmem, size = 0x2000, scoped, tag = 'input window, operand 0, single buffered']
    #allocation3 [shape = 's32[1]{0}', space=sflag, size = 0x4, scoped, tag = 'scoped memory for tpu_custom_call.1']
    #allocation4 [shape = 's32[1]{0}', space=sflag, size = 0x4, scoped, tag = 'scoped memory for tpu_custom_call.1']
    #allocation5 [shape = 'u8[131072]{0}', space=vmem, size = 0x20000, scoped, tag = 'input window, operand 1, single buffered']
    #allocation6 [shape = 's32[1]{0}', space=sflag, size = 0x4, scoped, tag = 'scoped memory for tpu_custom_call.1']
    #allocation7 [shape = 'u8[8192]{0}', space=vmem, size = 0x2000, scoped, tag = 'output window, operand 0, single buffered']
    %8 = vsyncpa [#allocation3], 0
    %9 = vsyncpa [#allocation6], 0
    %10 = vsyncpa [#allocation4], 0
    // Predicated region
    $region2: #{tpu_custom_call.1} parent=1 // pred_check
      _
    $region3: #{tpu_custom_call.1} parent=1 // pred_check_branch
      %12 = sbr.rel (0) target = $region5
    $region4: #{tpu_custom_call.1} parent=1 // pred_region
      %s14 = ssub.s32 256, 256
      %15 = vsyncadd [#allocation3], %s14
      %s16 = sshll.u32 [#allocation2], 4
      %s17 = int_to_ptr.vmem [resolvable:$true] %s16
      %22 = dma.hbm_to_vmem [thread:$0]  %s0, 256, %s17, [#allocation3], 128, 128, 8
    $region5: #{tpu_custom_call.1} parent=1 // pred_fallthru
      _
    // Predicated region
    $region6: #{tpu_custom_call.1} parent=1 // pred_check
      _
    $region7: #{tpu_custom_call.1} parent=1 // pred_check_branch
      %24 = sbr.rel (0) target = $region9
    $region8: #{tpu_custom_call.1} parent=1 // pred_region
      %s26 = ssub.s32 4096, 4096
      %27 = vsyncadd [#allocation6], %s26
      %s28 = sshll.u32 [#allocation5], 4
      %s29 = int_to_ptr.vmem [resolvable:$true] %s28
      %34 = dma.hbm_to_vmem [thread:$0]  %s1, 4096, %s29, [#allocation6], 256, 256, 16
    $region9: #{tpu_custom_call.1} parent=1 // pred_fallthru
      _
    // Predicated region
    $region10: #{tpu_custom_call.1} parent=1 // pred_check
      _
    $region11: #{tpu_custom_call.1} parent=1 // pred_check_branch
      %36 = sbr.rel (0) target = $region13
    $region12: #{tpu_custom_call.1} parent=1 // pred_region
      _
    $region13: #{tpu_custom_call.1} parent=1 // pred_fallthru
      _
    // Predicated region
    $region14: #{tpu_custom_call.1} parent=1 // pred_check
      _
    $region15: #{tpu_custom_call.1} parent=1 // pred_check_branch
      %38 = sbr.rel (0) target = $region17
    $region16: #{tpu_custom_call.1} parent=1 // pred_region
      %39 = dma.done [#allocation3], 256
    $region17: #{tpu_custom_call.1} parent=1 // pred_fallthru
      _
    // Predicated region
    $region18: #{tpu_custom_call.1} parent=1 // pred_check
      _
    $region19: #{tpu_custom_call.1} parent=1 // pred_check_branch
      %41 = sbr.rel (0) target = $region21
    $region20: #{tpu_custom_call.1} parent=1 // pred_region
      %42 = dma.done [#allocation6], 4096
    $region21: #{tpu_custom_call.1} parent=1 // pred_fallthru
      _
    %v43 = vld [vmem:[#allocation2] sm:$0xff]
    %v44 = vld [vmem:[#allocation2 + $0x8] sm:$0xff]
    %v45 = vld [vmem:[#allocation5] sm:$0xff]
    %v46 = vld [vmem:[#allocation5 + $0x8] sm:$0xff]
    %v47 = vld [vmem:[#allocation5 + $0x10] sm:$0xff]
    %v48 = vld [vmem:[#allocation5 + $0x18] sm:$0xff]
    %v49 = vld [vmem:[#allocation5 + $0x20] sm:$0xff]
    %v50 = vld [vmem:[#allocation5 + $0x28] sm:$0xff]
    %v51 = vld [vmem:[#allocation5 + $0x30] sm:$0xff]
    %v52 = vld [vmem:[#allocation5 + $0x38] sm:$0xff]
    %v53 = vld [vmem:[#allocation5 + $0x40] sm:$0xff]
    %v54 = vld [vmem:[#allocation5 + $0x48] sm:$0xff]
    %v55 = vld [vmem:[#allocation5 + $0x50] sm:$0xff]
    %v56 = vld [vmem:[#allocation5 + $0x58] sm:$0xff]
    %v57 = vld [vmem:[#allocation5 + $0x60] sm:$0xff]
    %v58 = vld [vmem:[#allocation5 + $0x68] sm:$0xff]
    %v59 = vld [vmem:[#allocation5 + $0x70] sm:$0xff]
    %v60 = vld [vmem:[#allocation5 + $0x78] sm:$0xff]
    %v61 = vld [vmem:[#allocation5 + $0x80] sm:$0xff]
    %v62 = vld [vmem:[#allocation5 + $0x88] sm:$0xff]
    %v63 = vld [vmem:[#allocation5 + $0x90] sm:$0xff]
    %v64 = vld [vmem:[#allocation5 + $0x98] sm:$0xff]
    %v65 = vld [vmem:[#allocation5 + $0xa0] sm:$0xff]
    %v66 = vld [vmem:[#allocation5 + $0xa8] sm:$0xff]
    %v67 = vld [vmem:[#allocation5 + $0xb0] sm:$0xff]
    %v68 = vld [vmem:[#allocation5 + $0xb8] sm:$0xff]
    %v69 = vld [vmem:[#allocation5 + $0xc0] sm:$0xff]
    %v70 = vld [vmem:[#allocation5 + $0xc8] sm:$0xff]
    %v71 = vld [vmem:[#allocation5 + $0xd0] sm:$0xff]
    %v72 = vld [vmem:[#allocation5 + $0xd8] sm:$0xff]
    %v73 = vld [vmem:[#allocation5 + $0xe0] sm:$0xff]
    %v74 = vld [vmem:[#allocation5 + $0xe8] sm:$0xff]
    %v75 = vld [vmem:[#allocation5 + $0xf0] sm:$0xff]
    %v76 = vld [vmem:[#allocation5 + $0xf8] sm:$0xff]
    %v77 = vld [vmem:[%s2] sm:$0x3]
    %v79 = vlaneseq
    %v80 = vshrl.u32 %v79, 7
    %v81 = vsub.s32 0, %v80
    %v82 = vrot.slane %v77, %v81
    %v83 = vlaneseq
    %v84 = vshrl.u32 %v83, 7
    %v85 = vsub.s32 1, %v84
    %v86 = vrot.slane %v77, %v85
    %89 = vmatprep.subr.mxu0 %v76
    %90 = vmatpush1.msra.mxu0 %v75
    %91 = vmatprep.subr.mxu0 %v74
    %92 = vmatpush1.msra.mxu0 %v73
    %93 = vmatprep.subr.mxu0 %v72
    %94 = vmatpush1.msra.mxu0 %v71
    %95 = vmatprep.subr.mxu0 %v70
    %96 = vmatpush1.msra.mxu0 %v69
    %97 = vmatprep.subr.mxu0 %v68
    %98 = vmatpush1.msra.mxu0 %v67
    %99 = vmatprep.subr.mxu0 %v66
    %100 = vmatpush1.msra.mxu0 %v65
    %101 = vmatprep.subr.mxu0 %v64
    %102 = vmatpush1.msra.mxu0 %v63
    %103 = vmatprep.subr.mxu0 %v62
    %104 = vmatpush1.msra.mxu0 %v61
    %105 = vmatprep.subr.mxu0 %v60
    %106 = vmatpush1.msra.mxu0 %v59
    %107 = vmatprep.subr.mxu0 %v58
    %108 = vmatpush1.msra.mxu0 %v57
    %109 = vmatprep.subr.mxu0 %v56
    %110 = vmatpush1.msra.mxu0 %v55
    %111 = vmatprep.subr.mxu0 %v54
    %112 = vmatpush1.msra.mxu0 %v53
    %113 = vmatprep.subr.mxu0 %v52
    %114 = vmatpush1.msra.mxu0 %v51
    %115 = vmatprep.subr.mxu0 %v50
    %116 = vmatpush1.msra.mxu0 %v49
    %117 = vmatprep.subr.mxu0 %v48
    %118 = vmatpush1.msra.mxu0 %v47
    %119 = vmatprep.subr.mxu0 %v46
    %120 = vmatpush1.msra.mxu0 %v45
    %121 = vmatprep.subr.mxu0 0.0
    %122 = vmatpush2.msra.mxu0 0.0
    %123 = vmatprep.subr.mxu0 0.0
    %124 = vmatpush2.msra.mxu0 0.0
    %125 = vmatprep.subr.mxu0 0.0
    %126 = vmatpush2.msra.mxu0 0.0
    %127 = vmatprep.subr.mxu0 0.0
    %128 = vmatpush2.msra.mxu0 0.0
    %129 = vmatprep.subr.mxu0 0.0
    %130 = vmatpush2.msra.mxu0 0.0
    %131 = vmatprep.subr.mxu0 0.0
    %132 = vmatpush2.msra.mxu0 0.0
    %133 = vmatprep.subr.mxu0 0.0
    %134 = vmatpush2.msra.mxu0 0.0
    %135 = vmatprep.subr.mxu0 0.0
    %136 = vmatpush2.msra.mxu0 0.0
    %137 = vmatprep.subr.mxu0 0.0
    %138 = vmatpush2.msra.mxu0 0.0
    %139 = vmatprep.subr.mxu0 0.0
    %140 = vmatpush2.msra.mxu0 0.0
    %141 = vmatprep.subr.mxu0 0.0
    %142 = vmatpush2.msra.mxu0 0.0
    %143 = vmatprep.subr.mxu0 0.0
    %144 = vmatpush2.msra.mxu0 0.0
    %145 = vmatprep.subr.mxu0 0.0
    %146 = vmatpush2.msra.mxu0 0.0
    %147 = vmatprep.subr.mxu0 0.0
    %148 = vmatpush2.msra.mxu0 0.0
    %149 = vmatprep.subr.mxu0 0.0
    %150 = vmatpush2.msra.mxu0 0.0
    %151 = vmatprep.subr.mxu0 0.0
    %152 = vmatpush2.msra.mxu0 0.0
    %153 = vmatprep.mubr.f32.mxu0 0.0
    %154 = vmatmul.mubr.f32.gmra.mxu0 %v43
    %v155 = vpop.f32.mrf.mxu0
    %v156 = vadd.f32 %v82, %v155
    %v157 = vpop.f32.mrf.mxu0
    %v158 = vadd.f32 %v86, %v157
    %159 = vmatprep.mubr.f32.mxu0 0.0
    %160 = vmatmul.mubr.f32.gmra.mxu0 %v44
    %v161 = vpop.f32.mrf.mxu0
    %v162 = vadd.f32 %v82, %v161
    %v163 = vpop.f32.mrf.mxu0
    %v164 = vadd.f32 %v86, %v163
    %165 = vdwg.mxu0
    %v166 = vmax.f32 %v156, 0.0
    %v167 = vmax.f32 %v162, 0.0
    %v168 = vsub.f32 0.0, %v158
    %v169 = vsub.f32 0.0, %v164
    %v170 = vmul.f32 %v168, 1.442695
    %v171 = vpow.pop %v170
    %v172 = vmul.f32 %v169, 1.442695
    %v173 = vpow.pop %v172
    %v174 = vadd.f32 %v171, 1.0
    %v175 = vadd.f32 %v173, 1.0
    %v176 = vrcp.pop %v174
    %v177 = vmul.f32 1.0, %v176
    %v178 = vrcp.pop %v175
    %v179 = vmul.f32 1.0, %v178
    %v180 = vsub.f32 %v166, %v43
    %v181 = vsub.f32 %v167, %v44
    %v182 = vmul.f32 %v177, %v180
    %v183 = vmul.f32 %v179, %v181
    %v184 = vadd.f32 %v43, %v182
    %v185 = vadd.f32 %v44, %v183
    %186 = vst [vmem:[#allocation7] sm:$0xff] %v184
    %187 = vst [vmem:[#allocation7 + $0x8] sm:$0xff] %v185
    // Predicated region
    $region22: #{tpu_custom_call.1} parent=1 // pred_check
      _
    $region23: #{tpu_custom_call.1} parent=1 // pred_check_branch
      %189 = sbr.rel (0) target = $region25
    $region24: #{tpu_custom_call.1} parent=1 // pred_region
      %s191 = ssub.s32 256, 256
      %192 = vsyncadd [#allocation4], %s191
      %s193 = sshll.u32 [#allocation7], 4
      %s194 = int_to_ptr.vmem [resolvable:$true] %s193
      %199 = dma.vmem_to_hbm [thread:$0]  %s194, 256, %s3, [#allocation4], 128, 128, 8
    $region25: #{tpu_custom_call.1} parent=1 // pred_fallthru
      _
    // Predicated region
    $region26: #{tpu_custom_call.1} parent=1 // pred_check
      _
    $region27: #{tpu_custom_call.1} parent=1 // pred_check_branch
      %201 = sbr.rel (0) target = $region29
    $region28: #{tpu_custom_call.1} parent=1 // pred_region
      %202 = dma.done [#allocation4], 256
    $region29: #{tpu_custom_call.1} parent=1 // pred_fallthru
      _
    %203 = vsyncpa [#allocation3], 1
    %204 = vsyncpa [#allocation6], 1
    %205 = vsyncpa [#allocation4], 1

// kernel: tpu_custom_call.1
$region0: #{tpu_custom_call.1}
  #allocation0 [shape = 'u32[]', space=smem, size = 0x4, offset = 0x4, fixed_abs, tag = 'smem constant byte address 0x4 - core index']
  #allocation1 [shape = 'u32[144,128]{1,0:T(1,128)}', space=vmem, size = 0x12000, scoped, tag = 'internal scratch']
  %s0 = inlined_call_operand.hbm [shape: f32[16,128], index: 0, kind: input, shape index: {}]
  %s1 = inlined_call_operand.hbm [shape: f32[128,256], index: 1, kind: input, shape index: {}]
  %s2 = inlined_call_operand.vmem [shape: f32[1,256], index: 2, kind: input, shape index: {}]
  %s3 = inlined_call_operand.hbm [shape: f32[16,128], index: 3, kind: output, shape index: {}]
  %s4 = sld [smem:[#allocation0]]
  $region30: #{tpu_custom_call.1} parent=0
    _
  %s6 = ssub.s32 1, %s4
  %s7 = scalar_select 0, %s6, %s4
  $region1: #{tpu_custom_call.1} parent=0
    #allocation2 [shape = 'u8[8192]{0}', space=vmem, size = 0x2000, scoped, tag = 'input window, operand 0, single buffered']
    #allocation3 [shape = 's32[1]{0}', space=sflag, size = 0x4, scoped, tag = 'scoped memory for tpu_custom_call.1']
    #allocation4 [shape = 's32[1]{0}', space=sflag, size = 0x4, scoped, tag = 'scoped memory for tpu_custom_call.1']
    #allocation5 [shape = 'u8[131072]{0}', space=vmem, size = 0x20000, scoped, tag = 'input window, operand 1, single buffered']
    #allocation6 [shape = 's32[1]{0}', space=sflag, size = 0x4, scoped, tag = 'scoped memory for tpu_custom_call.1']
    #allocation7 [shape = 'u8[8192]{0}', space=vmem, size = 0x2000, scoped, tag = 'output window, operand 0, single buffered']
    %8 = vsyncpa [#allocation3], 0
    %9 = vsyncpa [#allocation6], 0
    %10 = vsyncpa [#allocation4], 0
    // Predicated region
    $region2: #{tpu_custom_call.1} parent=1 // pred_check
      _
    $region3: #{tpu_custom_call.1} parent=1 // pred_check_branch
      %12 = sbr.rel (0) target = $region5
    $region4: #{tpu_custom_call.1} parent=1 // pred_region
      %s14 = ssub.s32 256, 256
      %15 = vsyncadd [#allocation3], %s14
      %s16 = sshll.u32 [#allocation2], 4
      %s17 = int_to_ptr.vmem [resolvable:$true] %s16
      %22 = dma.hbm_to_vmem [thread:$0]  %s0, 256, %s17, [#allocation3], 128, 128, 8
    $region5: #{tpu_custom_call.1} parent=1 // pred_fallthru
      _
    // Predicated region
    $region6: #{tpu_custom_call.1} parent=1 // pred_check
      _
    $region7: #{tpu_custom_call.1} parent=1 // pred_check_branch
      %24 = sbr.rel (0) target = $region9
    $region8: #{tpu_custom_call.1} parent=1 // pred_region
      %s26 = ssub.s32 4096, 4096
      %27 = vsyncadd [#allocation6], %s26
      %s28 = sshll.u32 [#allocation5], 4
      %s29 = int_to_ptr.vmem [resolvable:$true] %s28
      %34 = dma.hbm_to_vmem [thread:$0]  %s1, 4096, %s29, [#allocation6], 256, 256, 16
    $region9: #{tpu_custom_call.1} parent=1 // pred_fallthru
      _
    // Predicated region
    $region10: #{tpu_custom_call.1} parent=1 // pred_check
      _
    $region11: #{tpu_custom_call.1} parent=1 // pred_check_branch
      %36 = sbr.rel (0) target = $region13
    $region12: #{tpu_custom_call.1} parent=1 // pred_region
      _
    $region13: #{tpu_custom_call.1} parent=1 // pred_fallthru
      _
    // Predicated region
    $region14: #{tpu_custom_call.1} parent=1 // pred_check
      _
    $region15: #{tpu_custom_call.1} parent=1 // pred_check_branch
      %38 = sbr.rel (0) target = $region17
    $region16: #{tpu_custom_call.1} parent=1 // pred_region
      %39 = dma.done [#allocation3], 256
    $region17: #{tpu_custom_call.1} parent=1 // pred_fallthru
      _
    // Predicated region
    $region18: #{tpu_custom_call.1} parent=1 // pred_check
      _
    $region19: #{tpu_custom_call.1} parent=1 // pred_check_branch
      %41 = sbr.rel (0) target = $region21
    $region20: #{tpu_custom_call.1} parent=1 // pred_region
      %42 = dma.done [#allocation6], 4096
    $region21: #{tpu_custom_call.1} parent=1 // pred_fallthru
      _
    %v43 = vld [vmem:[#allocation2] sm:$0xff]
    %v44 = vld [vmem:[#allocation2 + $0x8] sm:$0xff]
    %v45 = vld [vmem:[#allocation5] sm:$0xff]
    %v46 = vld [vmem:[#allocation5 + $0x8] sm:$0xff]
    %v47 = vld [vmem:[#allocation5 + $0x10] sm:$0xff]
    %v48 = vld [vmem:[#allocation5 + $0x18] sm:$0xff]
    %v49 = vld [vmem:[#allocation5 + $0x20] sm:$0xff]
    %v50 = vld [vmem:[#allocation5 + $0x28] sm:$0xff]
    %v51 = vld [vmem:[#allocation5 + $0x30] sm:$0xff]
    %v52 = vld [vmem:[#allocation5 + $0x38] sm:$0xff]
    %v53 = vld [vmem:[#allocation5 + $0x40] sm:$0xff]
    %v54 = vld [vmem:[#allocation5 + $0x48] sm:$0xff]
    %v55 = vld [vmem:[#allocation5 + $0x50] sm:$0xff]
    %v56 = vld [vmem:[#allocation5 + $0x58] sm:$0xff]
    %v57 = vld [vmem:[#allocation5 + $0x60] sm:$0xff]
    %v58 = vld [vmem:[#allocation5 + $0x68] sm:$0xff]
    %v59 = vld [vmem:[#allocation5 + $0x70] sm:$0xff]
    %v60 = vld [vmem:[#allocation5 + $0x78] sm:$0xff]
    %v61 = vld [vmem:[#allocation5 + $0x80] sm:$0xff]
    %v62 = vld [vmem:[#allocation5 + $0x88] sm:$0xff]
    %v63 = vld [vmem:[#allocation5 + $0x90] sm:$0xff]
    %v64 = vld [vmem:[#allocation5 + $0x98] sm:$0xff]
    %v65 = vld [vmem:[#allocation5 + $0xa0] sm:$0xff]
    %v66 = vld [vmem:[#allocation5 + $0xa8] sm:$0xff]
    %v67 = vld [vmem:[#allocation5 + $0xb0] sm:$0xff]
    %v68 = vld [vmem:[#allocation5 + $0xb8] sm:$0xff]
    %v69 = vld [vmem:[#allocation5 + $0xc0] sm:$0xff]
    %v70 = vld [vmem:[#allocation5 + $0xc8] sm:$0xff]
    %v71 = vld [vmem:[#allocation5 + $0xd0] sm:$0xff]
    %v72 = vld [vmem:[#allocation5 + $0xd8] sm:$0xff]
    %v73 = vld [vmem:[#allocation5 + $0xe0] sm:$0xff]
    %v74 = vld [vmem:[#allocation5 + $0xe8] sm:$0xff]
    %v75 = vld [vmem:[#allocation5 + $0xf0] sm:$0xff]
    %v76 = vld [vmem:[#allocation5 + $0xf8] sm:$0xff]
    %v77 = vld [vmem:[%s2] sm:$0x3]
    %v79 = vlaneseq
    %v80 = vshrl.u32 %v79, 7
    %v81 = vsub.s32 0, %v80
    %v82 = vrot.slane %v77, %v81
    %v83 = vlaneseq
    %v84 = vshrl.u32 %v83, 7
    %v85 = vsub.s32 1, %v84
    %v86 = vrot.slane %v77, %v85
    %89 = vmatprep.subr.mxu0 %v76
    %90 = vmatpush1.msra.mxu0 %v75
    %91 = vmatprep.subr.mxu0 %v74
    %92 = vmatpush1.msra.mxu0 %v73
    %93 = vmatprep.subr.mxu0 %v72
    %94 = vmatpush1.msra.mxu0 %v71
    %95 = vmatprep.subr.mxu0 %v70
    %96 = vmatpush1.msra.mxu0 %v69
    %97 = vmatprep.subr.mxu0 %v68
    %98 = vmatpush1.msra.mxu0 %v67
    %99 = vmatprep.subr.mxu0 %v66
    %100 = vmatpush1.msra.mxu0 %v65
    %101 = vmatprep.subr.mxu0 %v64
    %102 = vmatpush1.msra.mxu0 %v63
    %103 = vmatprep.subr.mxu0 %v62
    %104 = vmatpush1.msra.mxu0 %v61
    %105 = vmatprep.subr.mxu0 %v60
    %106 = vmatpush1.msra.mxu0 %v59
    %107 = vmatprep.subr.mxu0 %v58
    %108 = vmatpush1.msra.mxu0 %v57
    %109 = vmatprep.subr.mxu0 %v56
    %110 = vmatpush1.msra.mxu0 %v55
    %111 = vmatprep.subr.mxu0 %v54
    %112 = vmatpush1.msra.mxu0 %v53
    %113 = vmatprep.subr.mxu0 %v52
    %114 = vmatpush1.msra.mxu0 %v51
    %115 = vmatprep.subr.mxu0 %v50
    %116 = vmatpush1.msra.mxu0 %v49
    %117 = vmatprep.subr.mxu0 %v48
    %118 = vmatpush1.msra.mxu0 %v47
    %119 = vmatprep.subr.mxu0 %v46
    %120 = vmatpush1.msra.mxu0 %v45
    %121 = vmatprep.subr.mxu0 0.0
    %122 = vmatpush2.msra.mxu0 0.0
    %123 = vmatprep.subr.mxu0 0.0
    %124 = vmatpush2.msra.mxu0 0.0
    %125 = vmatprep.subr.mxu0 0.0
    %126 = vmatpush2.msra.mxu0 0.0
    %127 = vmatprep.subr.mxu0 0.0
    %128 = vmatpush2.msra.mxu0 0.0
    %129 = vmatprep.subr.mxu0 0.0
    %130 = vmatpush2.msra.mxu0 0.0
    %131 = vmatprep.subr.mxu0 0.0
    %132 = vmatpush2.msra.mxu0 0.0
    %133 = vmatprep.subr.mxu0 0.0
    %134 = vmatpush2.msra.mxu0 0.0
    %135 = vmatprep.subr.mxu0 0.0
    %136 = vmatpush2.msra.mxu0 0.0
    %137 = vmatprep.subr.mxu0 0.0
    %138 = vmatpush2.msra.mxu0 0.0
    %139 = vmatprep.subr.mxu0 0.0
    %140 = vmatpush2.msra.mxu0 0.0
    %141 = vmatprep.subr.mxu0 0.0
    %142 = vmatpush2.msra.mxu0 0.0
    %143 = vmatprep.subr.mxu0 0.0
    %144 = vmatpush2.msra.mxu0 0.0
    %145 = vmatprep.subr.mxu0 0.0
    %146 = vmatpush2.msra.mxu0 0.0
    %147 = vmatprep.subr.mxu0 0.0
    %148 = vmatpush2.msra.mxu0 0.0
    %149 = vmatprep.subr.mxu0 0.0
    %150 = vmatpush2.msra.mxu0 0.0
    %151 = vmatprep.subr.mxu0 0.0
    %152 = vmatpush2.msra.mxu0 0.0
    %153 = vmatprep.mubr.f32.mxu0 0.0
    %154 = vmatmul.mubr.f32.gmra.mxu0 %v43
    %v155 = vpop.f32.mrf.mxu0
    %v156 = vadd.f32 %v82, %v155
    %v157 = vpop.f32.mrf.mxu0
    %v158 = vadd.f32 %v86, %v157
    %159 = vmatprep.mubr.f32.mxu0 0.0
    %160 = vmatmul.mubr.f32.gmra.mxu0 %v44
    %v161 = vpop.f32.mrf.mxu0
    %v162 = vadd.f32 %v82, %v161
    %v163 = vpop.f32.mrf.mxu0
    %v164 = vadd.f32 %v86, %v163
    %165 = vdwg.mxu0
    %v166 = vmax.f32 %v156, 0.0
    %v167 = vmax.f32 %v162, 0.0
    %v168 = vsub.f32 0.0, %v158
    %v169 = vsub.f32 0.0, %v164
    %v170 = vmul.f32 %v168, 1.442695
    %v171 = vpow.pop %v170
    %v172 = vmul.f32 %v169, 1.442695
    %v173 = vpow.pop %v172
    %v174 = vadd.f32 %v171, 1.0
    %v175 = vadd.f32 %v173, 1.0
    %v176 = vrcp.pop %v174
    %v177 = vmul.f32 1.0, %v176
    %v178 = vrcp.pop %v175
    %v179 = vmul.f32 1.0, %v178
    %v180 = vsub.f32 %v166, %v43
    %v181 = vsub.f32 %v167, %v44
    %v182 = vmul.f32 %v177, %v180
    %v183 = vmul.f32 %v179, %v181
    %v184 = vadd.f32 %v43, %v182
    %v185 = vadd.f32 %v44, %v183
    %186 = vst [vmem:[#allocation7] sm:$0xff] %v184
    %187 = vst [vmem:[#allocation7 + $0x8] sm:$0xff] %v185
    // Predicated region
    $region22: #{tpu_custom_call.1} parent=1 // pred_check
      _
    $region23: #{tpu_custom_call.1} parent=1 // pred_check_branch
      %189 = sbr.rel (0) target = $region25
    $region24: #{tpu_custom_call.1} parent=1 // pred_region
      %s191 = ssub.s32 256, 256
      %192 = vsyncadd [#allocation4], %s191
      %s193 = sshll.u32 [#allocation7], 4
      %s194 = int_to_ptr.vmem [resolvable:$true] %s193
      %199 = dma.vmem_to_hbm [thread:$0]  %s194, 256, %s3, [#allocation4], 128, 128, 8
    $region25: #{tpu_custom_call.1} parent=1 // pred_fallthru
      _
    // Predicated region
    $region26: #{tpu_custom_call.1} parent=1 // pred_check
      _
    $region27: #{tpu_custom_call.1} parent=1 // pred_check_branch
      %201 = sbr.rel (0) target = $region29
    $region28: #{tpu_custom_call.1} parent=1 // pred_region
      %202 = dma.done [#allocation4], 256
    $region29: #{tpu_custom_call.1} parent=1 // pred_fallthru
      _
    %203 = vsyncpa [#allocation3], 1
    %204 = vsyncpa [#allocation6], 1
    %205 = vsyncpa [#allocation4], 1

</llo_original>
